<compile_context>
chip_gen: v7x
topology: tpu7x:2x2x1
jax: 0.10.0
libtpu: 0.0.40
codegen_flags: <defaults>
</compile_context>

<pallas_src>
import functools

import jax
import jax.numpy as jnp
from jax.experimental import pallas as pl
from jax.experimental.pallas import tpu as pltpu


def _round_up(x, m):
    return ((x + m - 1) // m) * m


def decoder_kernel(h_ref, v_ref, oh_ref, ov3_ref, hout_ref, vout_ref, *,
                   num_species, n_rows):
    tn = h_ref.shape[0]

    # ---- scalar head: h @ Oh (f32 accumulation on the MXU) --------------
    h_ = jnp.dot(h_ref[...], oh_ref[...],
                 preferred_element_type=jnp.float32)              # (TN, S)
    s = h_.shape[-1]

    if s >= num_species:                                          # static branch
        nb = s - num_species
        # lane mask: which columns belong to the softmax logits
        col = jax.lax.broadcasted_iota(jnp.int32, (tn, s), 1)
        is_logit = col >= nb
        # row mask: rows past N belong to the (discarded) partial last block;
        # zero them so exp() never sees garbage / NaN.
        row = pl.program_id(0) * tn + jax.lax.broadcasted_iota(
            jnp.int32, (tn, 1), 0)
        valid = row < n_rows

        neg_inf = jnp.float32(-jnp.inf)
        logits = jnp.where(is_logit, jnp.where(valid, h_, 0.0), neg_inf)
        m = jnp.max(logits, axis=-1, keepdims=True)
        e = jnp.exp(logits - m)                 # exp(-inf) = 0 on non-logit cols
        denom = jnp.sum(e, axis=-1, keepdims=True)
        soft = e / denom
        # single full-width unmasked store (no lane-offset sub-stores)
        hout_ref[...] = jnp.where(is_logit, soft, h_)
    else:
        hout_ref[...] = h_

    # ---- vector head: one MXU matmul against the block-diagonal Ov3 -----
    # v block is (TN, 3*dim) lane-dense; result (TN, 3*V) == (N, V, 3) flat.
    vout_ref[...] = jnp.dot(v_ref[...], ov3_ref[...],
                            preferred_element_type=jnp.float32)


def decoder_forward(h, v, Oh, Ov, num_species=5, block_n=1024):
    """h: (N, dim), v: (N, dim, 3), Oh: (dim, S), Ov: (dim, V).

    Inputs may be bf16 (recommended) or f32; outputs are f32.
    """
    N, dim = h.shape
    assert v.shape == (N, dim, 3)
    S = Oh.shape[-1]
    V = Ov.shape[-1]

    # free view: merge the trailing (dim, 3) dims -> lane-dense (N, 3*dim)
    v_flat = v.reshape(N, dim * 3)

    # tiny block-diagonal weight so the vector head contracts over 3*dim:
    #   Ov3[d*3 + i, f*3 + j] = Ov[d, f] * (i == j)
    Ov3 = jnp.kron(Ov, jnp.eye(3, dtype=Ov.dtype))          # (3*dim, 3*V)

    # ---- row-tile selection ---------------------------------------------
    min_itemsize = min(jnp.dtype(h.dtype).itemsize, jnp.dtype(v.dtype).itemsize)
    mult = max(8, 32 // min_itemsize)          # sublane packing: 8/16/32 rows

    # VMEM budget for double-buffered inputs (~12 MiB) -> max rows per tile
    per_row_bytes = dim * jnp.dtype(h.dtype).itemsize \
        + 3 * dim * jnp.dtype(v.dtype).itemsize
    max_rows = max(mult, ((12 * 1024 * 1024) // (2 * per_row_bytes)) // mult * mult)

    # split so the parallel grid axis has >= 2 blocks (both v7x TCs busy)
    half_rows = _round_up(max(pl.cdiv(N, 2), 1), mult)
    TN = min(_round_up(block_n, mult), max_rows, half_rows)
    TN = max(TN, mult)
    grid = (pl.cdiv(N, TN),)                   # no wrapper pad; partial last block

    kernel = functools.partial(decoder_kernel, num_species=num_species, n_rows=N)

    flops = 2 * N * dim * S + 2 * N * (3 * dim) * (3 * V) + 6 * N * num_species
    bytes_accessed = (N * dim * jnp.dtype(h.dtype).itemsize
                      + N * 3 * dim * jnp.dtype(v.dtype).itemsize
                      + dim * S * jnp.dtype(Oh.dtype).itemsize
                      + 9 * dim * V * jnp.dtype(Ov.dtype).itemsize
                      + N * S * 4 + N * 3 * V * 4)

    h_out, v_out_flat = pl.pallas_call(
        kernel,
        out_shape=(
            jax.ShapeDtypeStruct((N, S), jnp.float32),
            jax.ShapeDtypeStruct((N, V * 3), jnp.float32),
        ),
        grid=grid,
        in_specs=[
            pl.BlockSpec((TN, dim), lambda i: (i, 0)),          # h rows
            pl.BlockSpec((TN, dim * 3), lambda i: (i, 0)),      # v rows (flat)
            pl.BlockSpec((dim, S), lambda i: (0, 0)),           # Oh (broadcast)
            pl.BlockSpec((dim * 3, V * 3), lambda i: (0, 0)),   # Ov3 (broadcast)
        ],
        out_specs=(
            pl.BlockSpec((TN, S), lambda i: (i, 0)),
            pl.BlockSpec((TN, V * 3), lambda i: (i, 0)),
        ),
        compiler_params=pltpu.CompilerParams(
            dimension_semantics=("parallel",),
            vmem_limit_bytes=32 * 1024 * 1024,   # safe on v7x's 64 MiB VMEM
        ),
        cost_estimate=pl.CostEstimate(
            flops=flops,
            transcendentals=N * num_species,
            bytes_accessed=bytes_accessed,
        ),
    )(h, v_flat, Oh, Ov3)

    # (N, V*3) is exactly the row-major flattening of (N, V, 3)
    v_out = v_out_flat.reshape(N, V, 3)
    return h_out, jnp.squeeze(v_out)


def reference_forward(h, v, Oh, Ov, num_species=5):
    """Pure-JAX reference replicating the PyTorch Decoder semantics (f32 math)."""
    h = h.astype(jnp.float32)
    v = v.astype(jnp.float32)
    Oh = Oh.astype(jnp.float32)
    Ov = Ov.astype(jnp.float32)
    h_ = h @ Oh
    v_out = jnp.einsum('ndi,df->nfi', v, Ov)
    S = h_.shape[-1]
    if S >= num_species:
        h1 = h_[..., :S - num_species]
        h2 = jax.nn.softmax(h_[..., S - num_species:], axis=-1)
        h_out = jnp.concatenate([h1, h2], axis=-1)
    else:
        h_out = h_
    return h_out, jnp.squeeze(v_out)


if __name__ == "__main__":
    num_species = 5
    dim = 32
    num_scalar_out = 16      # >= num_species -> exercises the softmax branch
    num_vector_out = 1       # exercises the .squeeze() path
    N = 48                   # nodes; makes a 2-block grid with a partial tile

    key = jax.random.PRNGKey(0)
    kh, kv, koh, kov = jax.random.split(key, 4)
    # bf16 inputs: kernel is HBM-bound, bf16 halves input traffic
    h = jax.random.normal(kh, (N, dim), jnp.float32).astype(jnp.bfloat16)
    v = jax.random.normal(kv, (N, dim, 3), jnp.float32).astype(jnp.bfloat16)
    Oh = jax.random.normal(koh, (dim, num_scalar_out), jnp.float32).astype(jnp.bfloat16)
    Ov = jax.random.normal(kov, (dim, num_vector_out), jnp.float32).astype(jnp.bfloat16)

    h_out, v_out = decoder_forward(h, v, Oh, Ov, num_species=num_species)
    jax.block_until_ready((h_out, v_out))

    h_ref, v_ref = reference_forward(h, v, Oh, Ov, num_species=num_species)
    assert h_out.shape == (N, num_scalar_out), h_out.shape
    assert v_out.shape == v_ref.shape, (v_out.shape, v_ref.shape)
    assert jnp.allclose(h_out, h_ref, atol=1e-3, rtol=1e-3)
    assert jnp.allclose(v_out, v_ref, atol=1e-3, rtol=1e-3)

    print("KERNEL_OK")
</pallas_src>

<mosaic_0001>
module attributes {stable_mosaic.version = 11 : i64} {
  func.func @decoder_kernel(%arg0: i32, %arg1: memref<32x32xbf16, #tpu.memory_space<vmem>>, %arg2: memref<32x96xbf16, #tpu.memory_space<vmem>>, %arg3: memref<32x16xbf16, #tpu.memory_space<vmem>>, %arg4: memref<96x3xbf16, #tpu.memory_space<vmem>>, %arg5: memref<32x16xf32, #tpu.memory_space<vmem>>, %arg6: memref<32x3xf32, #tpu.memory_space<vmem>>) attributes {dimension_semantics = [#tpu.dimension_semantics<parallel>], iteration_bounds = array<i64: 2>, scalar_prefetch = 0 : i64, scratch_operands = 0 : i64, tpu.core_type = #tpu.core_type<tc>, window_params = [{transform_indices = @transform_0, window_bounds = array<i64: 32, 32>}, {transform_indices = @transform_1, window_bounds = array<i64: 32, 96>}, {pipeline_mode = #tpu.pipeline_mode<synchronous>, transform_indices = @transform_2, window_bounds = array<i64: 32, 16>}, {pipeline_mode = #tpu.pipeline_mode<synchronous>, transform_indices = @transform_3, window_bounds = array<i64: 96, 3>}, {transform_indices = @transform_4, window_bounds = array<i64: 32, 16>}, {transform_indices = @transform_5, window_bounds = array<i64: 32, 3>}]} {
    %c0 = arith.constant 0 : index
    %c0_0 = arith.constant 0 : index
    %0 = vector.load %arg1[%c0, %c0_0] : memref<32x32xbf16, #tpu.memory_space<vmem>>, vector<32x32xbf16>
    %c0_1 = arith.constant 0 : index
    %c0_2 = arith.constant 0 : index
    %1 = vector.load %arg3[%c0_1, %c0_2] : memref<32x16xbf16, #tpu.memory_space<vmem>>, vector<32x16xbf16>
    %cst = arith.constant dense<0.000000e+00> : vector<32x16xf32>
    %2 = tpu.matmul %0, %1, %cst {dimension_numbers = #tpu.dot_dimension_numbers<[1], [0], [0], [1], [0, 0, 1, 1], [], []>} : vector<32x32xbf16>, vector<32x16xbf16>, vector<32x16xf32> -> vector<32x16xf32>
    %3 = tpu.iota {dimensions = array<i32: 1>} : vector<32x16xi32>
    %c11_i32 = arith.constant 11 : i32
    %4 = vector.broadcast %c11_i32 : i32 to vector<32x16xi32>
    %5 = arith.cmpi sge, %3, %4 : vector<32x16xi32>
    %c32_i32 = arith.constant 32 : i32
    %6 = arith.muli %arg0, %c32_i32 : i32
    %7 = tpu.iota {dimensions = array<i32: 0>} : vector<32x1xi32>
    %8 = vector.broadcast %6 : i32 to vector<32x1xi32>
    %9 = arith.addi %8, %7 : vector<32x1xi32>
    %c48_i32 = arith.constant 48 : i32
    %10 = vector.broadcast %c48_i32 : i32 to vector<32x1xi32>
    %11 = arith.cmpi slt, %9, %10 : vector<32x1xi32>
    %cst_3 = arith.constant 0.000000e+00 : f32
    %12 = vector.shape_cast %11 : vector<32x1xi1> to vector<32x1xi1>
    %13 = vector.broadcast %12 : vector<32x1xi1> to vector<32x16xi1>
    %14 = vector.broadcast %cst_3 : f32 to vector<32x16xf32>
    %15 = arith.select %13, %2, %14 : vector<32x16xi1>, vector<32x16xf32>
    %cst_4 = arith.constant 0xFF800000 : f32
    %16 = vector.broadcast %cst_4 : f32 to vector<32x16xf32>
    %17 = arith.select %5, %15, %16 : vector<32x16xi1>, vector<32x16xf32>
    %cst_5 = arith.constant dense<0xFF800000> : vector<32xf32>
    %18 = vector.multi_reduction <maximumf>, %17, %cst_5 [1] : vector<32x16xf32> to vector<32xf32>
    %19 = vector.shape_cast %18 : vector<32xf32> to vector<32x1xf32>
    %20 = vector.broadcast %19 : vector<32x1xf32> to vector<32x16xf32>
    %21 = arith.subf %17, %20 : vector<32x16xf32>
    %22 = math.exp %21 : vector<32x16xf32>
    %cst_6 = arith.constant dense<0.000000e+00> : vector<32xf32>
    %23 = vector.multi_reduction <add>, %22, %cst_6 [1] : vector<32x16xf32> to vector<32xf32>
    %24 = vector.shape_cast %23 : vector<32xf32> to vector<32x1xf32>
    %25 = vector.broadcast %24 : vector<32x1xf32> to vector<32x16xf32>
    %26 = arith.divf %22, %25 : vector<32x16xf32>
    %27 = arith.select %5, %26, %2 : vector<32x16xi1>, vector<32x16xf32>
    %c0_7 = arith.constant 0 : index
    %c0_8 = arith.constant 0 : index
    %28 = vector.load %arg5[%c0_7, %c0_8] : memref<32x16xf32, #tpu.memory_space<vmem>>, vector<32x16xf32>
    tpu.vector_store %arg5[%c0_7, %c0_8], %27 {strides = array<i32>} : memref<32x16xf32, #tpu.memory_space<vmem>>, vector<32x16xf32>,
    %c0_9 = arith.constant 0 : index
    %c0_10 = arith.constant 0 : index
    %29 = vector.load %arg2[%c0_9, %c0_10] : memref<32x96xbf16, #tpu.memory_space<vmem>>, vector<32x96xbf16>
    %c0_11 = arith.constant 0 : index
    %c0_12 = arith.constant 0 : index
    %30 = vector.load %arg4[%c0_11, %c0_12] : memref<96x3xbf16, #tpu.memory_space<vmem>>, vector<96x3xbf16>
    %cst_13 = arith.constant dense<0.000000e+00> : vector<32x3xf32>
    %31 = tpu.matmul %29, %30, %cst_13 {dimension_numbers = #tpu.dot_dimension_numbers<[1], [0], [0], [1], [0, 0, 1, 1], [], []>} : vector<32x96xbf16>, vector<96x3xbf16>, vector<32x3xf32> -> vector<32x3xf32>
    %c0_14 = arith.constant 0 : index
    %c0_15 = arith.constant 0 : index
    %32 = vector.load %arg6[%c0_14, %c0_15] : memref<32x3xf32, #tpu.memory_space<vmem>>, vector<32x3xf32>
    tpu.vector_store %arg6[%c0_14, %c0_15], %31 {strides = array<i32>} : memref<32x3xf32, #tpu.memory_space<vmem>>, vector<32x3xf32>,
    return
  }
  func.func @transform_0(%arg0: i32) -> (i32, i32) {
    %c0_i32 = arith.constant 0 : i32
    %c0_i32_0 = arith.constant 0 : i32
    return %arg0, %c0_i32 : i32, i32
  }
  func.func @transform_1(%arg0: i32) -> (i32, i32) {
    %c0_i32 = arith.constant 0 : i32
    %c0_i32_0 = arith.constant 0 : i32
    return %arg0, %c0_i32 : i32, i32
  }
  func.func @transform_2(%arg0: i32) -> (i32, i32) {
    %c0_i32 = arith.constant 0 : i32
    %c0_i32_0 = arith.constant 0 : i32
    %c0_i32_1 = arith.constant 0 : i32
    return %c0_i32, %c0_i32_0 : i32, i32
  }
  func.func @transform_3(%arg0: i32) -> (i32, i32) {
    %c0_i32 = arith.constant 0 : i32
    %c0_i32_0 = arith.constant 0 : i32
    %c0_i32_1 = arith.constant 0 : i32
    return %c0_i32, %c0_i32_0 : i32, i32
  }
  func.func @transform_4(%arg0: i32) -> (i32, i32) {
    %c0_i32 = arith.constant 0 : i32
    %c0_i32_0 = arith.constant 0 : i32
    return %arg0, %c0_i32 : i32, i32
  }
  func.func @transform_5(%arg0: i32) -> (i32, i32) {
    %c0_i32 = arith.constant 0 : i32
    %c0_i32_0 = arith.constant 0 : i32
    return %arg0, %c0_i32 : i32, i32
  }
}

</mosaic_0001>

<llo_original>
// kernel: tpu_custom_call.1
$region0: #{tpu_custom_call.1}
  #allocation0 [shape = 'u32[]', space=smem, size = 0x4, offset = 0x4, fixed_abs, tag = 'smem constant byte address 0x4 - core index']
  #allocation1 [shape = 'u32[144,128]{1,0:T(1,128)}', space=vmem, size = 0x12000, scoped, tag = 'internal scratch']
  %s0 = inlined_call_operand.vmem [shape: bf16[48,32], index: 0, kind: input, shape index: {}]
  %s1 = inlined_call_operand.vmem [shape: bf16[48,96], index: 1, kind: input, shape index: {}]
  %s2 = inlined_call_operand.vmem [shape: bf16[32,16], index: 2, kind: input, shape index: {}]
  %s3 = inlined_call_operand.vmem [shape: bf16[96,3], index: 3, kind: input, shape index: {}]
  %s4 = inlined_call_operand.vmem [shape: f32[48,16], index: 4, kind: output, shape index: {0}]
  %s5 = inlined_call_operand.vmem [shape: f32[48,3], index: 5, kind: output, shape index: {1}]
  %6 = xla_tuple %s4, %s5
  %s7 = sld [smem:[#allocation0]]
  $region153: #{tpu_custom_call.1} parent=0
    _
  %s9 = ssub.s32 1, %s7
  %s10 = scalar_select 0, %s9, %s7
  $region1: #{tpu_custom_call.1} parent=0
    #allocation2 [shape = 'u8[32768]{0}', space=vmem, size = 0x8000, scoped, tag = 'output window, operand 0']
    #allocation3 [shape = 'u8[32768]{0}', space=vmem, size = 0x8000, scoped, tag = 'output window, operand 1']
    loop: start=0, step=1, limit=4
    $region2: #{tpu_custom_call.1} parent=1 // loop_pre_header
      _
    $region3: #{tpu_custom_call.1} parent=1 // loop_header
      %s12 = sphi 0, %s16
      %p13 = scmp.ge.s32.totalorder %s12, 4
      %s22 = sphi 0, %s24
      %s25 = sphi 0, %s22
      %s26 = sphi 0, %s25
      %s42 = sphi 0, %s26
      %s48 = sphi 0, %s50
      %s51 = sphi 0, %s48
      %s52 = sphi 0, %s51
      %s68 = sphi 0, %s52
      %s72 = sphi 0, %s72
      %s74 = sphi 0, %s72
      %s75 = sphi 0, %s74
      %s89 = sphi 0, %s75
      %s93 = sphi 0, %s93
      %s95 = sphi 0, %s93
      %s96 = sphi 0, %s95
      %s110 = sphi 0, %s96
      %s116 = sphi 0, %s118
      %s119 = sphi 0, %s116
      %s120 = sphi 0, %s119
      %s136 = sphi 0, %s120
      %s142 = sphi 0, %s144
      %s145 = sphi 0, %s142
      %s146 = sphi 0, %s145
      %s162 = sphi 0, %s146
    $region4: #{tpu_custom_call.1} parent=1 // loop_header_branch
      %15 = sbr.rel (%p13) target = $region8
    $region5: #{tpu_custom_call.1} parent=1 // loop_body
      %s17 = ssub.s32 %s12, 1
      %s18 = ssub.s32 %s12, 2
      %s19 = sadd.s32 %s12, 1
      %s20 = ssub.s32 %s12, %s19
      %p21 = scmp.eq.s32.totalorder %s20, 0
      %s23 = sadd.s32 %s22, 1
      %s24 = scalar_select %p21, %s22, %s23
      %p27 = pneg %p21
      %p28 = scmp.eq.s32.totalorder %s12, 1
      %p29 = por %p27, %p28
      %p30 = scmp.ne.s32.totalorder %s22, %s25
      %p31 = scmp.eq.s32.totalorder %s12, 0
      %p32 = por %p30, %p31
      %p33 = scmp.ne.s32.totalorder %s22, %s25
      %p34 = scmp.eq.s32.totalorder %s17, 1
      %p35 = por %p33, %p34
      %p36 = scmp.ne.s32.totalorder %s25, %s26
      %p37 = scmp.eq.s32.totalorder %s17, 0
      %p38 = por %p36, %p37
      %p39 = scmp.ne.s32.totalorder %s25, %s26
      %p40 = scmp.eq.s32.totalorder %s18, 1
      %p41 = por %p39, %p40
      %p43 = scmp.ne.s32.totalorder %s26, %s42
      %p44 = scmp.eq.s32.totalorder %s18, 0
      %p45 = por %p43, %p44
      %s46 = ssub.s32 %s12, %s19
      %p47 = scmp.eq.s32.totalorder %s46, 0
      %s49 = sadd.s32 %s48, 1
      %s50 = scalar_select %p47, %s48, %s49
      %p53 = pneg %p47
      %p54 = scmp.eq.s32.totalorder %s12, 1
      %p55 = por %p53, %p54
      %p56 = scmp.ne.s32.totalorder %s48, %s51
      %p57 = scmp.eq.s32.totalorder %s12, 0
      %p58 = por %p56, %p57
      %p59 = scmp.ne.s32.totalorder %s48, %s51
      %p60 = scmp.eq.s32.totalorder %s17, 1
      %p61 = por %p59, %p60
      %p62 = scmp.ne.s32.totalorder %s51, %s52
      %p63 = scmp.eq.s32.totalorder %s17, 0
      %p64 = por %p62, %p63
      %p65 = scmp.ne.s32.totalorder %s51, %s52
      %p66 = scmp.eq.s32.totalorder %s18, 1
      %p67 = por %p65, %p66
      %p69 = scmp.ne.s32.totalorder %s52, %s68
      %p70 = scmp.eq.s32.totalorder %s18, 0
      %p71 = por %p69, %p70
      %s73 = sadd.s32 %s72, 1
      %p76 = scmp.eq.s32.totalorder %s12, 1
      %p77 = scmp.ne.s32.totalorder %s72, %s74
      %p78 = scmp.eq.s32.totalorder %s12, 0
      %p79 = por %p77, %p78
      %p80 = scmp.ne.s32.totalorder %s72, %s74
      %p81 = scmp.eq.s32.totalorder %s17, 1
      %p82 = por %p80, %p81
      %p83 = scmp.ne.s32.totalorder %s74, %s75
      %p84 = scmp.eq.s32.totalorder %s17, 0
      %p85 = por %p83, %p84
      %p86 = scmp.ne.s32.totalorder %s74, %s75
      %p87 = scmp.eq.s32.totalorder %s18, 1
      %p88 = por %p86, %p87
      %p90 = scmp.ne.s32.totalorder %s75, %s89
      %p91 = scmp.eq.s32.totalorder %s18, 0
      %p92 = por %p90, %p91
      %s94 = sadd.s32 %s93, 1
      %p97 = scmp.eq.s32.totalorder %s12, 1
      %p98 = scmp.ne.s32.totalorder %s93, %s95
      %p99 = scmp.eq.s32.totalorder %s12, 0
      %p100 = por %p98, %p99
      %p101 = scmp.ne.s32.totalorder %s93, %s95
      %p102 = scmp.eq.s32.totalorder %s17, 1
      %p103 = por %p101, %p102
      %p104 = scmp.ne.s32.totalorder %s95, %s96
      %p105 = scmp.eq.s32.totalorder %s17, 0
      %p106 = por %p104, %p105
      %p107 = scmp.ne.s32.totalorder %s95, %s96
      %p108 = scmp.eq.s32.totalorder %s18, 1
      %p109 = por %p107, %p108
      %p111 = scmp.ne.s32.totalorder %s96, %s110
      %p112 = scmp.eq.s32.totalorder %s18, 0
      %p113 = por %p111, %p112
      %s114 = ssub.s32 %s12, %s19
      %p115 = scmp.eq.s32.totalorder %s114, 0
      %s117 = sadd.s32 %s116, 1
      %s118 = scalar_select %p115, %s116, %s117
      %p121 = pneg %p115
      %p122 = scmp.eq.s32.totalorder %s12, 1
      %p123 = por %p121, %p122
      %p124 = scmp.ne.s32.totalorder %s116, %s119
      %p125 = scmp.eq.s32.totalorder %s12, 0
      %p126 = por %p124, %p125
      %p127 = scmp.ne.s32.totalorder %s116, %s119
      %p128 = scmp.eq.s32.totalorder %s17, 1
      %p129 = por %p127, %p128
      %p130 = scmp.ne.s32.totalorder %s119, %s120
      %p131 = scmp.eq.s32.totalorder %s17, 0
      %p132 = por %p130, %p131
      %p133 = scmp.ne.s32.totalorder %s119, %s120
      %p134 = scmp.eq.s32.totalorder %s18, 1
      %p135 = por %p133, %p134
      %p137 = scmp.ne.s32.totalorder %s120, %s136
      %p138 = scmp.eq.s32.totalorder %s18, 0
      %p139 = por %p137, %p138
      %s140 = ssub.s32 %s12, %s19
      %p141 = scmp.eq.s32.totalorder %s140, 0
      %s143 = sadd.s32 %s142, 1
      %s144 = scalar_select %p141, %s142, %s143
      %p147 = pneg %p141
      %p148 = scmp.eq.s32.totalorder %s12, 1
      %p149 = por %p147, %p148
      %p150 = scmp.ne.s32.totalorder %s142, %s145
      %p151 = scmp.eq.s32.totalorder %s12, 0
      %p152 = por %p150, %p151
      %p153 = scmp.ne.s32.totalorder %s142, %s145
      %p154 = scmp.eq.s32.totalorder %s17, 1
      %p155 = por %p153, %p154
      %p156 = scmp.ne.s32.totalorder %s145, %s146
      %p157 = scmp.eq.s32.totalorder %s17, 0
      %p158 = por %p156, %p157
      %p159 = scmp.ne.s32.totalorder %s145, %s146
      %p160 = scmp.eq.s32.totalorder %s18, 1
      %p161 = por %p159, %p160
      %p163 = scmp.ne.s32.totalorder %s146, %s162
      %p164 = scmp.eq.s32.totalorder %s18, 0
      %p165 = por %p163, %p164
      %p166 = scmp.le.s32.totalorder 1, %s12
      %p167 = scmp.lt.s32.totalorder %s12, 3
      %p168 = pnand %p166, %p167
      %p169 = pneg %p168
      // Predicated region
      $region9: #{tpu_custom_call.1} parent=5 // pred_check
        _
      $region10: #{tpu_custom_call.1} parent=5 // pred_check_branch
        %171 = sbr.rel (%p168) target = $region12
      $region11: #{tpu_custom_call.1} parent=5 // pred_region
        %s172 = ssub.s32 %s12, 1
        // Predicated region
        $region13: #{tpu_custom_call.1} parent=11 // pred_check
          %p173 = pneg %p85
        $region14: #{tpu_custom_call.1} parent=11 // pred_check_branch
          %175 = sbr.rel (%p173) target = $region16
        $region15: #{tpu_custom_call.1} parent=11 // pred_region
          _
        $region16: #{tpu_custom_call.1} parent=11 // pred_fallthru
          _
        // Predicated region
        $region17: #{tpu_custom_call.1} parent=11 // pred_check
          %p176 = pneg %p106
        $region18: #{tpu_custom_call.1} parent=11 // pred_check_branch
          %178 = sbr.rel (%p176) target = $region20
        $region19: #{tpu_custom_call.1} parent=11 // pred_region
          _
        $region20: #{tpu_custom_call.1} parent=11 // pred_fallthru
          _
      $region12: #{tpu_custom_call.1} parent=5 // pred_fallthru
        _
      %p179 = scmp.lt.s32.totalorder %s12, 2
      // Predicated region
      $region21: #{tpu_custom_call.1} parent=5 // pred_check
        %p180 = pneg %p179
      $region22: #{tpu_custom_call.1} parent=5 // pred_check_branch
        %182 = sbr.rel (%p180) target = $region24
      $region23: #{tpu_custom_call.1} parent=5 // pred_region
        // Predicated region
        $region25: #{tpu_custom_call.1} parent=23 // pred_check
          %p183 = pneg %p32
        $region26: #{tpu_custom_call.1} parent=23 // pred_check_branch
          %185 = sbr.rel (%p183) target = $region28
        $region27: #{tpu_custom_call.1} parent=23 // pred_region
          %s186 = smul.u32 4, %s12
          %s187 = ssub.s32 6, %s186
          %p188 = scmp.lt.s32.totalorder %s187, 4
          %s189 = scalar_select %p188, %s187, 4
          %s190 = smul.u32 64, %s189
          %p191 = scmp.lt.s32.totalorder %s186, 5
          %s192 = scalar_select %p191, %s186, 5
          %s193 = smul.addr %s192, 4
          %s194 = scalar_lea.vmem %s0, %s193
          %s195 = smul.u32 4, %s12
          %s196 = ssub.s32 6, %s195
          %p197 = scmp.lt.s32.totalorder %s196, 4
          %s198 = scalar_select %p197, %s196, 4
          %s199 = smul.u32 64, %s198
        $region28: #{tpu_custom_call.1} parent=23 // pred_fallthru
          _
        // Predicated region
        $region29: #{tpu_custom_call.1} parent=23 // pred_check
          %p200 = pneg %p58
        $region30: #{tpu_custom_call.1} parent=23 // pred_check_branch
          %202 = sbr.rel (%p200) target = $region32
        $region31: #{tpu_custom_call.1} parent=23 // pred_region
          %s203 = smul.u32 4, %s12
          %s204 = ssub.s32 6, %s203
          %p205 = scmp.lt.s32.totalorder %s204, 4
          %s206 = scalar_select %p205, %s204, 4
          %s207 = smul.u32 64, %s206
          %p208 = scmp.lt.s32.totalorder %s203, 5
          %s209 = scalar_select %p208, %s203, 5
          %s210 = smul.addr %s209, 4
          %s211 = scalar_lea.vmem %s1, %s210
          %s212 = smul.u32 4, %s12
          %s213 = ssub.s32 6, %s212
          %p214 = scmp.lt.s32.totalorder %s213, 4
          %s215 = scalar_select %p214, %s213, 4
          %s216 = smul.u32 64, %s215
        $region32: #{tpu_custom_call.1} parent=23 // pred_fallthru
          _
      $region24: #{tpu_custom_call.1} parent=5 // pred_fallthru
        _
      %p217 = scmp.le.s32.totalorder 1, %s12
      %p218 = scmp.lt.s32.totalorder %s12, 3
      %p219 = pnand %p217, %p218
      %p220 = pneg %p219
      // Predicated region
      $region33: #{tpu_custom_call.1} parent=5 // pred_check
        _
      $region34: #{tpu_custom_call.1} parent=5 // pred_check_branch
        %222 = sbr.rel (%p219) target = $region36
      $region35: #{tpu_custom_call.1} parent=5 // pred_region
        %s223 = ssub.s32 %s12, 1
        %s224 = smul.u32 4, %s17
        %s225 = ssub.s32 6, %s224
        %p226 = scmp.lt.s32.totalorder %s225, 4
        %s227 = scalar_select %p226, %s225, 4
        %s228 = smul.u32 64, %s227
        %p229 = scmp.lt.s32.totalorder %s224, 5
        %s230 = scalar_select %p229, %s224, 5
        %s231 = smul.addr %s230, 4
        %s232 = scalar_lea.vmem %s0, %s231
        %p233 = pneg %p38
        %p234 = pneg %p35
        %s235 = smul.u32 4, %s17
        %s236 = ssub.s32 6, %s235
        %p237 = scmp.lt.s32.totalorder %s236, 4
        %s238 = scalar_select %p237, %s236, 4
        %s239 = smul.u32 64, %s238
        %p240 = scmp.lt.s32.totalorder %s235, 5
        %s241 = scalar_select %p240, %s235, 5
        %s242 = smul.addr %s241, 4
        %s243 = scalar_lea.vmem %s1, %s242
        %p244 = pneg %p64
        %p245 = pneg %p61
        %p246 = pneg %p85
        %p247 = pneg %p82
        %p248 = pneg %p106
        %p249 = pneg %p103
        %p250 = pneg %p132
        %p251 = pneg %p129
        %s252 = sand.u32 %s119, 1
        %s253 = sand.u32 %s119, 1
        %s254 = smul.addr %s253, 32
        %s255 = scalar_lea.vmem [#allocation2], %s254
        %p256 = pneg %p158
        %p257 = pneg %p155
        %s258 = sand.u32 %s145, 1
        %s259 = sand.u32 %s145, 1
        %s260 = smul.addr %s259, 32
        %s261 = scalar_lea.vmem [#allocation3], %s260
        %s262 = smul.u32 4, %s17
        %s263 = ssub.s32 6, %s262
        %p264 = scmp.lt.s32.totalorder %s263, 4
        %s265 = scalar_select %p264, %s263, 4
        %s266 = smul.u32 64, %s265
        %p267 = scmp.lt.s32.totalorder %s262, 5
        %s268 = scalar_select %p267, %s262, 5
        %s269 = smul.addr %s268, 4
        %s270 = scalar_lea.vmem %s0, %s269
        %s271 = smul.u32 4, %s17
        %s272 = ssub.s32 6, %s271
        %p273 = scmp.lt.s32.totalorder %s272, 4
        %s274 = scalar_select %p273, %s272, 4
        %s275 = smul.u32 64, %s274
        %s276 = smul.u32 4, %s17
        %s277 = ssub.s32 6, %s276
        %p278 = scmp.lt.s32.totalorder %s277, 4
        %s279 = scalar_select %p278, %s277, 4
        %s280 = smul.u32 64, %s279
        %p281 = scmp.lt.s32.totalorder %s276, 5
        %s282 = scalar_select %p281, %s276, 5
        %s283 = smul.addr %s282, 4
        %s284 = scalar_lea.vmem %s1, %s283
        %s285 = smul.u32 4, %s17
        %s286 = ssub.s32 6, %s285
        %p287 = scmp.lt.s32.totalorder %s286, 4
        %s288 = scalar_select %p287, %s286, 4
        %s289 = smul.u32 64, %s288
        %s290 = smul.u32 4, %s17
        %s291 = ssub.s32 6, %s290
        %p292 = scmp.lt.s32.totalorder %s291, 4
        %s293 = scalar_select %p292, %s291, 4
        %s294 = smul.u32 128, %s293
        %s295 = smul.u32 4, %s17
        %s296 = ssub.s32 6, %s295
        %p297 = scmp.lt.s32.totalorder %s296, 4
        %s298 = scalar_select %p297, %s296, 4
        %s299 = smul.u32 128, %s298
        %v301 = vld [vmem:[%s270] sm:$0xf]
        %v302 = vld [vmem:[%s270 + $0x4] sm:$0xf]
        %v303 = vld [vmem:[%s270 + $0x8] sm:$0xf]
        %v304 = vld [vmem:[%s270 + $0xc] sm:$0xf]
        %v305 = vld [vmem:[%s2] sm:$0xf]
        %v306 = vld [vmem:[%s2 + $0x4] sm:$0xf]
        %v307 = vld [vmem:[%s2 + $0x8] sm:$0xf]
        %v308 = vld [vmem:[%s2 + $0xc] sm:$0xf]
        %v313 = vunpack.c.l.b16 %v301
        %v314 = vunpack.c.l.b16 %v302
        %v315 = vunpack.c.l.b16 %v303
        %v316 = vunpack.c.l.b16 %v304
        %v317 = vpack.c.b16 %v314, %v313
        %v318 = vpack.c.b16 %v316, %v315
        %v323 = vunpack.c.l.b16 %v305
        %v324 = vunpack.c.l.b16 %v306
        %v325 = vunpack.c.l.b16 %v307
        %v326 = vunpack.c.l.b16 %v308
        %v327 = vpack.c.b16 %v324, %v323
        %v328 = vpack.c.b16 %v326, %v325
        %vm331 = vcmask 261120
        %v333 = vsel %vm331, %v317, 0
        %v336 = vsel %vm331, %v318, 0
        %338 = vmatprep.subr.bf16.mxu0 0
        %339 = vmatpush1.bf16.msra.mxu0 %v327
        %340 = vmatprep.subr.bf16.mxu0 0
        %341 = vmatpush1.bf16.msra.mxu0 %v328
        %342 = vmatprep.subr.bf16.mxu0 0
        %343 = vmatpush1.bf16.msra.mxu0 0
        %344 = vmatprep.subr.bf16.mxu0 0
        %345 = vmatpush1.bf16.msra.mxu0 0
        %346 = vmatprep.subr.bf16.mxu0 0
        %347 = vmatpush1.bf16.msra.mxu0 0
        %348 = vmatprep.subr.bf16.mxu0 0
        %349 = vmatpush1.bf16.msra.mxu0 0
        %350 = vmatprep.subr.bf16.mxu0 0
        %351 = vmatpush1.bf16.msra.mxu0 0
        %352 = vmatprep.subr.bf16.mxu0 0
        %353 = vmatpush1.bf16.msra.mxu0 0
        %354 = vmatprep.subr.bf16.mxu0 0
        %355 = vmatpush1.bf16.msra.mxu0 0
        %356 = vmatprep.subr.bf16.mxu0 0
        %357 = vmatpush1.bf16.msra.mxu0 0
        %358 = vmatprep.subr.bf16.mxu0 0
        %359 = vmatpush1.bf16.msra.mxu0 0
        %360 = vmatprep.subr.bf16.mxu0 0
        %361 = vmatpush1.bf16.msra.mxu0 0
        %362 = vmatprep.subr.bf16.mxu0 0
        %363 = vmatpush1.bf16.msra.mxu0 0
        %364 = vmatprep.subr.bf16.mxu0 0
        %365 = vmatpush1.bf16.msra.mxu0 0
        %366 = vmatprep.subr.bf16.mxu0 0
        %367 = vmatpush1.bf16.msra.mxu0 0
        %368 = vmatprep.subr.bf16.mxu0 0
        %369 = vmatpush1.bf16.msra.mxu0 0
        %370 = vmatprep.mubr.bf16.mxu0 0
        %371 = vmatmul.mubr.bf16.gmra.mrb[0].mxu0 %v333
        %v372 = vpop.f32.mrb[0].mxu0
        %v373 = vadd.f32 0.0, %v372
        %v374 = vpop.f32.mrb[0].mxu0
        %v375 = vpop.f32.mrb[0].mxu0
        %v376 = vadd.f32 0.0, %v375
        %v377 = vpop.f32.mrb[0].mxu0
        %378 = vmatprep.mubr.bf16.mxu0 0
        %379 = vmatmul.mubr.bf16.gmra.mrb[0].mxu0 %v336
        %v380 = vpop.f32.mrb[0].mxu0
        %v381 = vadd.f32 0.0, %v380
        %v382 = vpop.f32.mrb[0].mxu0
        %v383 = vpop.f32.mrb[0].mxu0
        %v384 = vadd.f32 0.0, %v383
        %v385 = vpop.f32.mrb[0].mxu0
        %386 = vdwg.mxu0
        %v387 = vlaneseq
        %v388 = vand.u32 %v387, 127
        %vm389 = vcmp.ge.s32.totalorder %v388, 11
        %s390 = smul.u32 %s17, 32
        %v391 = vlaneseq
        %v392 = vshrl.u32 %v391, 7
        %v393 = vadd.s32 %v392, 8
        %v394 = vadd.s32 %v392, 16
        %v395 = vadd.s32 %v392, 24
        %v396 = vstv %s390
        %v397 = vadd.s32 %v396, %v392
        %v398 = vadd.s32 %v396, %v393
        %v399 = vadd.s32 %v396, %v394
        %v400 = vadd.s32 %v396, %v395
        %vm401 = vcmp.lt.s32.totalorder %v397, 48
        %vm402 = vcmp.lt.s32.totalorder %v398, 48
        %vm403 = vcmp.lt.s32.totalorder %v399, 48
        %vm404 = vcmp.lt.s32.totalorder %v400, 48
        %v405 = vsel %vm401, 1, 0
        %v406 = vsel %vm402, 1, 0
        %v407 = vsel %vm403, 1, 0
        %v408 = vsel %vm404, 1, 0
        %vm409 = vcmp.eq.s32.totalorder %v405, 1
        %vm410 = vcmp.eq.s32.totalorder %v406, 1
        %vm411 = vcmp.eq.s32.totalorder %v407, 1
        %vm412 = vcmp.eq.s32.totalorder %v408, 1
        %v413 = vsel %vm409, %v373, 0.0
        %v414 = vsel %vm410, %v376, 0.0
        %v415 = vsel %vm411, %v381, 0.0
        %v416 = vsel %vm412, %v384, 0.0
        %v417 = vsel %vm389, %v413, -inf
        %v418 = vsel %vm389, %v414, -inf
        %v419 = vsel %vm389, %v415, -inf
        %v420 = vsel %vm389, %v416, -inf
        %vm421 = vcmask 130048
        %v422 = vsel %vm421, %v417, -inf
        %423 = vmax.xlane.f32.xlu0 %v422
        %v424 = vpop.xlane.xlu0 %423
        %v425 = vsel %vm421, %v418, -inf
        %426 = vmax.xlane.f32.xlu0 %v425
        %v427 = vpop.xlane.xlu0 %426
        %v428 = vsel %vm421, %v419, -inf
        %429 = vmax.xlane.f32.xlu0 %v428
        %v430 = vpop.xlane.xlu0 %429
        %v431 = vsel %vm421, %v420, -inf
        %432 = vmax.xlane.f32.xlu0 %v431
        %v433 = vpop.xlane.xlu0 %432
        %v434 = vsub.f32 %v417, %v424
        %v435 = vsub.f32 %v418, %v427
        %v436 = vsub.f32 %v419, %v430
        %v437 = vsub.f32 %v420, %v433
        %v438 = vmul.f32 %v434, 1.442695
        %v439 = vpow.pop %v438
        %v440 = vmul.f32 %v435, 1.442695
        %v441 = vpow.pop %v440
        %v442 = vmul.f32 %v436, 1.442695
        %v443 = vpow.pop %v442
        %v444 = vmul.f32 %v437, 1.442695
        %v445 = vpow.pop %v444
        %v446 = vsel %vm421, %v439, 0.0
        %447 = vadd.xlane.f32.xlu0 %v446
        %v448 = vpop.xlane.xlu0 %447
        %v449 = vsel %vm421, %v441, 0.0
        %450 = vadd.xlane.f32.xlu0 %v449
        %v451 = vpop.xlane.xlu0 %450
        %v452 = vsel %vm421, %v443, 0.0
        %453 = vadd.xlane.f32.xlu0 %v452
        %v454 = vpop.xlane.xlu0 %453
        %v455 = vsel %vm421, %v445, 0.0
        %456 = vadd.xlane.f32.xlu0 %v455
        %v457 = vpop.xlane.xlu0 %456
        %v458 = vrcp.pop %v448
        %v459 = vmul.f32 %v439, %v458
        %v460 = vrcp.pop %v451
        %v461 = vmul.f32 %v441, %v460
        %v462 = vrcp.pop %v454
        %v463 = vmul.f32 %v443, %v462
        %v464 = vrcp.pop %v457
        %v465 = vmul.f32 %v445, %v464
        %v466 = vsel %vm389, %v459, %v373
        %v467 = vsel %vm389, %v461, %v376
        %v468 = vsel %vm389, %v463, %v381
        %v469 = vsel %vm389, %v465, %v384
        %470 = vst.msk [vmem:[%s255] sm:$0xff] %vm421, %v466
        %471 = vst.msk [vmem:[%s255 + $0x8] sm:$0xff] %vm421, %v467
        %472 = vst.msk [vmem:[%s255 + $0x10] sm:$0xff] %vm421, %v468
        %473 = vst.msk [vmem:[%s255 + $0x18] sm:$0xff] %vm421, %v469
        %v474 = vld [vmem:[%s284] sm:$0xf]
        %v475 = vld [vmem:[%s284 + $0x4] sm:$0xf]
        %v476 = vld [vmem:[%s284 + $0x8] sm:$0xf]
        %v477 = vld [vmem:[%s284 + $0xc] sm:$0xf]
        %v478 = vld [vmem:[%s3] sm:$0xf]
        %v479 = vld [vmem:[%s3 + $0x4] sm:$0xf]
        %v480 = vld [vmem:[%s3 + $0x8] sm:$0xf]
        %v481 = vld [vmem:[%s3 + $0xc] sm:$0xf]
        %v482 = vld [vmem:[%s3 + $0x10] sm:$0xf]
        %v483 = vld [vmem:[%s3 + $0x14] sm:$0xf]
        %v484 = vld [vmem:[%s3 + $0x18] sm:$0xf]
        %v485 = vld [vmem:[%s3 + $0x1c] sm:$0xf]
        %v486 = vld [vmem:[%s3 + $0x20] sm:$0xf]
        %v487 = vld [vmem:[%s3 + $0x24] sm:$0xf]
        %v488 = vld [vmem:[%s3 + $0x28] sm:$0xf]
        %v489 = vld [vmem:[%s3 + $0x2c] sm:$0xf]
        %v494 = vunpack.c.l.b16 %v474
        %v495 = vunpack.c.l.b16 %v475
        %v496 = vunpack.c.l.b16 %v476
        %v497 = vunpack.c.l.b16 %v477
        %v498 = vpack.c.b16 %v495, %v494
        %v499 = vpack.c.b16 %v497, %v496
        %v512 = vunpack.c.l.b16 %v478
        %v513 = vunpack.c.l.b16 %v479
        %v514 = vunpack.c.l.b16 %v480
        %v515 = vunpack.c.l.b16 %v481
        %v516 = vunpack.c.l.b16 %v482
        %v517 = vunpack.c.l.b16 %v483
        %v518 = vunpack.c.l.b16 %v484
        %v519 = vunpack.c.l.b16 %v485
        %v520 = vunpack.c.l.b16 %v486
        %v521 = vunpack.c.l.b16 %v487
        %v522 = vunpack.c.l.b16 %v488
        %v523 = vunpack.c.l.b16 %v489
        %v524 = vpack.c.b16 %v513, %v512
        %v525 = vpack.c.b16 %v515, %v514
        %v526 = vpack.c.b16 %v517, %v516
        %v527 = vpack.c.b16 %v519, %v518
        %v528 = vpack.c.b16 %v521, %v520
        %v529 = vpack.c.b16 %v523, %v522
        %vm536 = vcmask 785408
        %v538 = vsel %vm536, %v498, 0
        %v541 = vsel %vm536, %v499, 0
        %543 = vmatprep.subr.bf16.mxu0 0
        %544 = vmatpush1.bf16.msra.mxu0 %v524
        %545 = vmatprep.subr.bf16.mxu0 0
        %546 = vmatpush1.bf16.msra.mxu0 %v525
        %547 = vmatprep.subr.bf16.mxu0 0
        %548 = vmatpush1.bf16.msra.mxu0 %v526
        %549 = vmatprep.subr.bf16.mxu0 0
        %550 = vmatpush1.bf16.msra.mxu0 %v527
        %551 = vmatprep.subr.bf16.mxu0 0
        %552 = vmatpush1.bf16.msra.mxu0 %v528
        %553 = vmatprep.subr.bf16.mxu0 0
        %554 = vmatpush1.bf16.msra.mxu0 %v529
        %555 = vmatprep.subr.bf16.mxu0 0
        %556 = vmatpush1.bf16.msra.mxu0 0
        %557 = vmatprep.subr.bf16.mxu0 0
        %558 = vmatpush1.bf16.msra.mxu0 0
        %559 = vmatprep.subr.bf16.mxu0 0
        %560 = vmatpush1.bf16.msra.mxu0 0
        %561 = vmatprep.subr.bf16.mxu0 0
        %562 = vmatpush1.bf16.msra.mxu0 0
        %563 = vmatprep.subr.bf16.mxu0 0
        %564 = vmatpush1.bf16.msra.mxu0 0
        %565 = vmatprep.subr.bf16.mxu0 0
        %566 = vmatpush1.bf16.msra.mxu0 0
        %567 = vmatprep.subr.bf16.mxu0 0
        %568 = vmatpush1.bf16.msra.mxu0 0
        %569 = vmatprep.subr.bf16.mxu0 0
        %570 = vmatpush1.bf16.msra.mxu0 0
        %571 = vmatprep.subr.bf16.mxu0 0
        %572 = vmatpush1.bf16.msra.mxu0 0
        %573 = vmatprep.subr.bf16.mxu0 0
        %574 = vmatpush1.bf16.msra.mxu0 0
        %575 = vmatprep.mubr.bf16.mxu0 0
        %576 = vmatmul.mubr.bf16.gmra.mrb[0].mxu0 %v538
        %v577 = vpop.f32.mrb[0].mxu0
        %v578 = vadd.f32 0.0, %v577
        %v579 = vpop.f32.mrb[0].mxu0
        %v580 = vpop.f32.mrb[0].mxu0
        %v581 = vadd.f32 0.0, %v580
        %v582 = vpop.f32.mrb[0].mxu0
        %583 = vmatprep.mubr.bf16.mxu0 0
        %584 = vmatmul.mubr.bf16.gmra.mrb[0].mxu0 %v541
        %v585 = vpop.f32.mrb[0].mxu0
        %v586 = vadd.f32 0.0, %v585
        %v587 = vpop.f32.mrb[0].mxu0
        %v588 = vpop.f32.mrb[0].mxu0
        %v589 = vadd.f32 0.0, %v588
        %v590 = vpop.f32.mrb[0].mxu0
        %591 = vdwg.mxu0
        %vm592 = vcmask 23552
        %593 = vst.msk [vmem:[%s261] sm:$0xff] %vm592, %v578
        %594 = vst.msk [vmem:[%s261 + $0x8] sm:$0xff] %vm592, %v581
        %595 = vst.msk [vmem:[%s261 + $0x10] sm:$0xff] %vm592, %v586
        %596 = vst.msk [vmem:[%s261 + $0x18] sm:$0xff] %vm592, %v589
        %s597 = sand.u32 %s119, 1
        %s598 = sand.u32 %s119, 1
        %s599 = smul.addr %s598, 32
        %s600 = scalar_lea.vmem [#allocation2], %s599
        %s601 = sand.u32 %s145, 1
        %s602 = sand.u32 %s145, 1
        %s603 = smul.addr %s602, 32
        %s604 = scalar_lea.vmem [#allocation3], %s603
        // Predicated region
        $region37: #{tpu_custom_call.1} parent=35 // pred_check
          %p605 = pneg %p129
        $region38: #{tpu_custom_call.1} parent=35 // pred_check_branch
          %607 = sbr.rel (%p605) target = $region40
        $region39: #{tpu_custom_call.1} parent=35 // pred_region
          %s608 = smul.u32 4, %s17
          %s609 = ssub.s32 6, %s608
          %p610 = scmp.lt.s32.totalorder %s609, 4
          %s611 = scalar_select %p610, %s609, 4
          %s612 = smul.u32 128, %s611
          %p613 = scmp.ne.s32.totalorder 0, %s612
          %s614 = smul.addr %s608, 8
          %s615 = scalar_lea.vmem %s4, %s614
          // Predicated region
          $region41: #{tpu_custom_call.1} parent=39 // pred_check
            %p616 = pneg %p613
          $region42: #{tpu_custom_call.1} parent=39 // pred_check_branch
            %618 = sbr.rel (%p616) target = $region44
          $region43: #{tpu_custom_call.1} parent=39 // pred_region
            // Predicated region
            $region45: #{tpu_custom_call.1} parent=43 // pred_check
              _
            $region46: #{tpu_custom_call.1} parent=43 // pred_check_branch
              %620 = sbr.rel (0) target = $region48
            $region47: #{tpu_custom_call.1} parent=43 // pred_region
              // Predicated region
              $region67: #{tpu_custom_call.1} parent=47 // pred_check
                _
              $region68: #{tpu_custom_call.1} parent=47 // pred_check_branch
                %675 = sbr.rel (0) target = $region70
              $region69: #{tpu_custom_call.1} parent=47 // pred_region
                %s676 = sshrl.u32 %s611, 2
                // While loop
                $region71: #{tpu_custom_call.1} parent=69 // loop_pre_header
                  _
                $region72: #{tpu_custom_call.1} parent=69 // loop_header
                  %s678 = sphi 0, %s680
                  %p679 = scmp.ge.s32.totalorder %s678, %s676
                  %s683 = sphi 0, %s696
                  %s684 = sphi %s600, %s699
                  %s685 = sphi %s615, %s700
                $region73: #{tpu_custom_call.1} parent=69 // loop_header_branch
                  %682 = sbr.rel (%p679) target = $region77
                $region74: #{tpu_custom_call.1} parent=69 // loop_body
                  %v686 = vld [vmem:[%s684] sm:$0xff]
                  %687 = vst [vmem:[%s685] sm:$0xff] %v686
                  %v688 = vld [vmem:[%s684 + $0x8] sm:$0xff]
                  %689 = vst [vmem:[%s685 + $0x8] sm:$0xff] %v688
                  %v690 = vld [vmem:[%s684 + $0x10] sm:$0xff]
                  %691 = vst [vmem:[%s685 + $0x10] sm:$0xff] %v690
                  %v692 = vld [vmem:[%s684 + $0x18] sm:$0xff]
                  %693 = vst [vmem:[%s685 + $0x18] sm:$0xff] %v692
                  %s694 = sadd.s32 1, %s683
                  %p695 = scmp.ge.s32.totalorder %s694, %s676
                  %s696 = scalar_select %p695, 0, %s694
                  %s697 = smul.u32 %s696, 32
                  %s698 = smul.u32 %s696, 32
                  %s699 = scalar_lea.vmem %s600, %s697 [#allocation2]
                  %s700 = scalar_lea.vmem %s615, %s698
                $region75: #{tpu_custom_call.1} parent=69 // loop_footer
                  %s680 = sadd.s32 %s678, 1
                $region76: #{tpu_custom_call.1} parent=69 // loop_footer_branch
                  %677 = sbr.rel target = $region72
                $region77: #{tpu_custom_call.1} parent=69 // loop_exit
                  _
                %s701 = sshrl.u32 %s611, 2
                %s702 = sand.u32 %s611, 3
                %s703 = smul.u32 %s701, 4
                %s704 = smul.u32 8, %s703
                %s705 = scalar_lea.vmem %s600, %s704 [#allocation2]
                %s706 = smul.u32 8, %s703
                %s707 = scalar_lea.vmem %s615, %s706
                // While loop
                $region78: #{tpu_custom_call.1} parent=69 // loop_pre_header
                  _
                $region79: #{tpu_custom_call.1} parent=69 // loop_header
                  %s709 = sphi 0, %s711
                  %p710 = scmp.ge.s32.totalorder %s709, %s702
                  %s714 = sphi 0, %s721
                  %s715 = sphi %s705, %s724
                  %s716 = sphi %s707, %s725
                $region80: #{tpu_custom_call.1} parent=69 // loop_header_branch
                  %713 = sbr.rel (%p710) target = $region84
                $region81: #{tpu_custom_call.1} parent=69 // loop_body
                  %v717 = vld [vmem:[%s715] sm:$0xff]
                  %718 = vst [vmem:[%s716] sm:$0xff] %v717
                  %s719 = sadd.s32 1, %s714
                  %p720 = scmp.ge.s32.totalorder %s719, %s702
                  %s721 = scalar_select %p720, 0, %s719
                  %s722 = smul.u32 %s721, 8
                  %s723 = smul.u32 %s721, 8
                  %s724 = scalar_lea.vmem %s705, %s722 [#allocation2]
                  %s725 = scalar_lea.vmem %s707, %s723
                $region82: #{tpu_custom_call.1} parent=69 // loop_footer
                  %s711 = sadd.s32 %s709, 1
                $region83: #{tpu_custom_call.1} parent=69 // loop_footer_branch
                  %708 = sbr.rel target = $region79
                $region84: #{tpu_custom_call.1} parent=69 // loop_exit
                  _
              $region70: #{tpu_custom_call.1} parent=47 // pred_fallthru
                _
              // Predicated region
              $region85: #{tpu_custom_call.1} parent=47 // pred_check
                _
              $region86: #{tpu_custom_call.1} parent=47 // pred_check_branch
                %727 = sbr.rel target = $region88
              $region87: #{tpu_custom_call.1} parent=47 // pred_region
                _
              $region88: #{tpu_custom_call.1} parent=47 // pred_fallthru
                _
            $region48: #{tpu_custom_call.1} parent=43 // pred_fallthru
              _
            // Predicated region
            $region49: #{tpu_custom_call.1} parent=43 // pred_check
              _
            $region50: #{tpu_custom_call.1} parent=43 // pred_check_branch
              %622 = sbr.rel target = $region52
            $region51: #{tpu_custom_call.1} parent=43 // pred_region
              %s624 = sshrl.u32 %s611, 2
              // While loop
              $region53: #{tpu_custom_call.1} parent=51 // loop_pre_header
                _
              $region54: #{tpu_custom_call.1} parent=51 // loop_header
                %s626 = sphi 0, %s628
                %p627 = scmp.ge.s32.totalorder %s626, %s624
                %s631 = sphi 0, %s644
                %s632 = sphi %s600, %s647
                %s633 = sphi %s615, %s648
              $region55: #{tpu_custom_call.1} parent=51 // loop_header_branch
                %630 = sbr.rel (%p627) target = $region59
              $region56: #{tpu_custom_call.1} parent=51 // loop_body
                %v634 = vld [vmem:[%s632] sm:$0xff]
                %635 = vst [vmem:[%s633] sm:$0xff] %v634
                %v636 = vld [vmem:[%s632 + $0x8] sm:$0xff]
                %637 = vst [vmem:[%s633 + $0x8] sm:$0xff] %v636
                %v638 = vld [vmem:[%s632 + $0x10] sm:$0xff]
                %639 = vst [vmem:[%s633 + $0x10] sm:$0xff] %v638
                %v640 = vld [vmem:[%s632 + $0x18] sm:$0xff]
                %641 = vst [vmem:[%s633 + $0x18] sm:$0xff] %v640
                %s642 = sadd.s32 1, %s631
                %p643 = scmp.ge.s32.totalorder %s642, %s624
                %s644 = scalar_select %p643, 0, %s642
                %s645 = smul.u32 %s644, 32
                %s646 = smul.u32 %s644, 32
                %s647 = scalar_lea.vmem %s600, %s645 [#allocation2]
                %s648 = scalar_lea.vmem %s615, %s646
              $region57: #{tpu_custom_call.1} parent=51 // loop_footer
                %s628 = sadd.s32 %s626, 1
              $region58: #{tpu_custom_call.1} parent=51 // loop_footer_branch
                %625 = sbr.rel target = $region54
              $region59: #{tpu_custom_call.1} parent=51 // loop_exit
                _
              %s649 = sshrl.u32 %s611, 2
              %s650 = sand.u32 %s611, 3
              %s651 = smul.u32 %s649, 4
              %s652 = smul.u32 8, %s651
              %s653 = scalar_lea.vmem %s600, %s652 [#allocation2]
              %s654 = smul.u32 8, %s651
              %s655 = scalar_lea.vmem %s615, %s654
              // While loop
              $region60: #{tpu_custom_call.1} parent=51 // loop_pre_header
                _
              $region61: #{tpu_custom_call.1} parent=51 // loop_header
                %s657 = sphi 0, %s659
                %p658 = scmp.ge.s32.totalorder %s657, %s650
                %s662 = sphi 0, %s669
                %s663 = sphi %s653, %s672
                %s664 = sphi %s655, %s673
              $region62: #{tpu_custom_call.1} parent=51 // loop_header_branch
                %661 = sbr.rel (%p658) target = $region66
              $region63: #{tpu_custom_call.1} parent=51 // loop_body
                %v665 = vld [vmem:[%s663] sm:$0xff]
                %666 = vst [vmem:[%s664] sm:$0xff] %v665
                %s667 = sadd.s32 1, %s662
                %p668 = scmp.ge.s32.totalorder %s667, %s650
                %s669 = scalar_select %p668, 0, %s667
                %s670 = smul.u32 %s669, 8
                %s671 = smul.u32 %s669, 8
                %s672 = scalar_lea.vmem %s653, %s670 [#allocation2]
                %s673 = scalar_lea.vmem %s655, %s671
              $region64: #{tpu_custom_call.1} parent=51 // loop_footer
                %s659 = sadd.s32 %s657, 1
              $region65: #{tpu_custom_call.1} parent=51 // loop_footer_branch
                %656 = sbr.rel target = $region61
              $region66: #{tpu_custom_call.1} parent=51 // loop_exit
                _
            $region52: #{tpu_custom_call.1} parent=43 // pred_fallthru
              _
          $region44: #{tpu_custom_call.1} parent=39 // pred_fallthru
            _
          %728 = vnop
        $region40: #{tpu_custom_call.1} parent=35 // pred_fallthru
          _
        // Predicated region
        $region89: #{tpu_custom_call.1} parent=35 // pred_check
          %p729 = pneg %p155
        $region90: #{tpu_custom_call.1} parent=35 // pred_check_branch
          %731 = sbr.rel (%p729) target = $region92
        $region91: #{tpu_custom_call.1} parent=35 // pred_region
          %s732 = smul.u32 4, %s17
          %s733 = ssub.s32 6, %s732
          %p734 = scmp.lt.s32.totalorder %s733, 4
          %s735 = scalar_select %p734, %s733, 4
          %s736 = smul.u32 128, %s735
          %p737 = scmp.ne.s32.totalorder 0, %s736
          %s738 = smul.addr %s732, 8
          %s739 = scalar_lea.vmem %s5, %s738
          // Predicated region
          $region93: #{tpu_custom_call.1} parent=91 // pred_check
            %p740 = pneg %p737
          $region94: #{tpu_custom_call.1} parent=91 // pred_check_branch
            %742 = sbr.rel (%p740) target = $region96
          $region95: #{tpu_custom_call.1} parent=91 // pred_region
            // Predicated region
            $region97: #{tpu_custom_call.1} parent=95 // pred_check
              _
            $region98: #{tpu_custom_call.1} parent=95 // pred_check_branch
              %744 = sbr.rel (0) target = $region100
            $region99: #{tpu_custom_call.1} parent=95 // pred_region
              // Predicated region
              $region119: #{tpu_custom_call.1} parent=99 // pred_check
                _
              $region120: #{tpu_custom_call.1} parent=99 // pred_check_branch
                %799 = sbr.rel (0) target = $region122
              $region121: #{tpu_custom_call.1} parent=99 // pred_region
                %s800 = sshrl.u32 %s735, 2
                // While loop
                $region123: #{tpu_custom_call.1} parent=121 // loop_pre_header
                  _
                $region124: #{tpu_custom_call.1} parent=121 // loop_header
                  %s802 = sphi 0, %s804
                  %p803 = scmp.ge.s32.totalorder %s802, %s800
                  %s807 = sphi 0, %s820
                  %s808 = sphi %s604, %s823
                  %s809 = sphi %s739, %s824
                $region125: #{tpu_custom_call.1} parent=121 // loop_header_branch
                  %806 = sbr.rel (%p803) target = $region129
                $region126: #{tpu_custom_call.1} parent=121 // loop_body
                  %v810 = vld [vmem:[%s808] sm:$0xff]
                  %811 = vst [vmem:[%s809] sm:$0xff] %v810
                  %v812 = vld [vmem:[%s808 + $0x8] sm:$0xff]
                  %813 = vst [vmem:[%s809 + $0x8] sm:$0xff] %v812
                  %v814 = vld [vmem:[%s808 + $0x10] sm:$0xff]
                  %815 = vst [vmem:[%s809 + $0x10] sm:$0xff] %v814
                  %v816 = vld [vmem:[%s808 + $0x18] sm:$0xff]
                  %817 = vst [vmem:[%s809 + $0x18] sm:$0xff] %v816
                  %s818 = sadd.s32 1, %s807
                  %p819 = scmp.ge.s32.totalorder %s818, %s800
                  %s820 = scalar_select %p819, 0, %s818
                  %s821 = smul.u32 %s820, 32
                  %s822 = smul.u32 %s820, 32
                  %s823 = scalar_lea.vmem %s604, %s821 [#allocation3]
                  %s824 = scalar_lea.vmem %s739, %s822
                $region127: #{tpu_custom_call.1} parent=121 // loop_footer
                  %s804 = sadd.s32 %s802, 1
                $region128: #{tpu_custom_call.1} parent=121 // loop_footer_branch
                  %801 = sbr.rel target = $region124
                $region129: #{tpu_custom_call.1} parent=121 // loop_exit
                  _
                %s825 = sshrl.u32 %s735, 2
                %s826 = sand.u32 %s735, 3
                %s827 = smul.u32 %s825, 4
                %s828 = smul.u32 8, %s827
                %s829 = scalar_lea.vmem %s604, %s828 [#allocation3]
                %s830 = smul.u32 8, %s827
                %s831 = scalar_lea.vmem %s739, %s830
                // While loop
                $region130: #{tpu_custom_call.1} parent=121 // loop_pre_header
                  _
                $region131: #{tpu_custom_call.1} parent=121 // loop_header
                  %s833 = sphi 0, %s835
                  %p834 = scmp.ge.s32.totalorder %s833, %s826
                  %s838 = sphi 0, %s845
                  %s839 = sphi %s829, %s848
                  %s840 = sphi %s831, %s849
                $region132: #{tpu_custom_call.1} parent=121 // loop_header_branch
                  %837 = sbr.rel (%p834) target = $region136
                $region133: #{tpu_custom_call.1} parent=121 // loop_body
                  %v841 = vld [vmem:[%s839] sm:$0xff]
                  %842 = vst [vmem:[%s840] sm:$0xff] %v841
                  %s843 = sadd.s32 1, %s838
                  %p844 = scmp.ge.s32.totalorder %s843, %s826
                  %s845 = scalar_select %p844, 0, %s843
                  %s846 = smul.u32 %s845, 8
                  %s847 = smul.u32 %s845, 8
                  %s848 = scalar_lea.vmem %s829, %s846 [#allocation3]
                  %s849 = scalar_lea.vmem %s831, %s847
                $region134: #{tpu_custom_call.1} parent=121 // loop_footer
                  %s835 = sadd.s32 %s833, 1
                $region135: #{tpu_custom_call.1} parent=121 // loop_footer_branch
                  %832 = sbr.rel target = $region131
                $region136: #{tpu_custom_call.1} parent=121 // loop_exit
                  _
              $region122: #{tpu_custom_call.1} parent=99 // pred_fallthru
                _
              // Predicated region
              $region137: #{tpu_custom_call.1} parent=99 // pred_check
                _
              $region138: #{tpu_custom_call.1} parent=99 // pred_check_branch
                %851 = sbr.rel target = $region140
              $region139: #{tpu_custom_call.1} parent=99 // pred_region
                _
              $region140: #{tpu_custom_call.1} parent=99 // pred_fallthru
                _
            $region100: #{tpu_custom_call.1} parent=95 // pred_fallthru
              _
            // Predicated region
            $region101: #{tpu_custom_call.1} parent=95 // pred_check
              _
            $region102: #{tpu_custom_call.1} parent=95 // pred_check_branch
              %746 = sbr.rel target = $region104
            $region103: #{tpu_custom_call.1} parent=95 // pred_region
              %s748 = sshrl.u32 %s735, 2
              // While loop
              $region105: #{tpu_custom_call.1} parent=103 // loop_pre_header
                _
              $region106: #{tpu_custom_call.1} parent=103 // loop_header
                %s750 = sphi 0, %s752
                %p751 = scmp.ge.s32.totalorder %s750, %s748
                %s755 = sphi 0, %s768
                %s756 = sphi %s604, %s771
                %s757 = sphi %s739, %s772
              $region107: #{tpu_custom_call.1} parent=103 // loop_header_branch
                %754 = sbr.rel (%p751) target = $region111
              $region108: #{tpu_custom_call.1} parent=103 // loop_body
                %v758 = vld [vmem:[%s756] sm:$0xff]
                %759 = vst [vmem:[%s757] sm:$0xff] %v758
                %v760 = vld [vmem:[%s756 + $0x8] sm:$0xff]
                %761 = vst [vmem:[%s757 + $0x8] sm:$0xff] %v760
                %v762 = vld [vmem:[%s756 + $0x10] sm:$0xff]
                %763 = vst [vmem:[%s757 + $0x10] sm:$0xff] %v762
                %v764 = vld [vmem:[%s756 + $0x18] sm:$0xff]
                %765 = vst [vmem:[%s757 + $0x18] sm:$0xff] %v764
                %s766 = sadd.s32 1, %s755
                %p767 = scmp.ge.s32.totalorder %s766, %s748
                %s768 = scalar_select %p767, 0, %s766
                %s769 = smul.u32 %s768, 32
                %s770 = smul.u32 %s768, 32
                %s771 = scalar_lea.vmem %s604, %s769 [#allocation3]
                %s772 = scalar_lea.vmem %s739, %s770
              $region109: #{tpu_custom_call.1} parent=103 // loop_footer
                %s752 = sadd.s32 %s750, 1
              $region110: #{tpu_custom_call.1} parent=103 // loop_footer_branch
                %749 = sbr.rel target = $region106
              $region111: #{tpu_custom_call.1} parent=103 // loop_exit
                _
              %s773 = sshrl.u32 %s735, 2
              %s774 = sand.u32 %s735, 3
              %s775 = smul.u32 %s773, 4
              %s776 = smul.u32 8, %s775
              %s777 = scalar_lea.vmem %s604, %s776 [#allocation3]
              %s778 = smul.u32 8, %s775
              %s779 = scalar_lea.vmem %s739, %s778
              // While loop
              $region112: #{tpu_custom_call.1} parent=103 // loop_pre_header
                _
              $region113: #{tpu_custom_call.1} parent=103 // loop_header
                %s781 = sphi 0, %s783
                %p782 = scmp.ge.s32.totalorder %s781, %s774
                %s786 = sphi 0, %s793
                %s787 = sphi %s777, %s796
                %s788 = sphi %s779, %s797
              $region114: #{tpu_custom_call.1} parent=103 // loop_header_branch
                %785 = sbr.rel (%p782) target = $region118
              $region115: #{tpu_custom_call.1} parent=103 // loop_body
                %v789 = vld [vmem:[%s787] sm:$0xff]
                %790 = vst [vmem:[%s788] sm:$0xff] %v789
                %s791 = sadd.s32 1, %s786
                %p792 = scmp.ge.s32.totalorder %s791, %s774
                %s793 = scalar_select %p792, 0, %s791
                %s794 = smul.u32 %s793, 8
                %s795 = smul.u32 %s793, 8
                %s796 = scalar_lea.vmem %s777, %s794 [#allocation3]
                %s797 = scalar_lea.vmem %s779, %s795
              $region116: #{tpu_custom_call.1} parent=103 // loop_footer
                %s783 = sadd.s32 %s781, 1
              $region117: #{tpu_custom_call.1} parent=103 // loop_footer_branch
                %780 = sbr.rel target = $region113
              $region118: #{tpu_custom_call.1} parent=103 // loop_exit
                _
            $region104: #{tpu_custom_call.1} parent=95 // pred_fallthru
              _
          $region96: #{tpu_custom_call.1} parent=91 // pred_fallthru
            _
          %852 = vnop
        $region92: #{tpu_custom_call.1} parent=35 // pred_fallthru
          _
      $region36: #{tpu_custom_call.1} parent=5 // pred_fallthru
        _
      %p853 = scmp.le.s32.totalorder 2, %s12
      // Predicated region
      $region141: #{tpu_custom_call.1} parent=5 // pred_check
        %p854 = pneg %p853
      $region142: #{tpu_custom_call.1} parent=5 // pred_check_branch
        %856 = sbr.rel (%p854) target = $region144
      $region143: #{tpu_custom_call.1} parent=5 // pred_region
        %s857 = ssub.s32 %s12, 2
        // Predicated region
        $region145: #{tpu_custom_call.1} parent=143 // pred_check
          %p858 = pneg %p135
        $region146: #{tpu_custom_call.1} parent=143 // pred_check_branch
          %860 = sbr.rel (%p858) target = $region148
        $region147: #{tpu_custom_call.1} parent=143 // pred_region
          %s861 = sand.u32 %s120, 1
          %s862 = sand.u32 %s120, 1
          %s863 = smul.addr %s862, 32
          %s864 = scalar_lea.vmem [#allocation2], %s863
        $region148: #{tpu_custom_call.1} parent=143 // pred_fallthru
          _
        // Predicated region
        $region149: #{tpu_custom_call.1} parent=143 // pred_check
          %p865 = pneg %p161
        $region150: #{tpu_custom_call.1} parent=143 // pred_check_branch
          %867 = sbr.rel (%p865) target = $region152
        $region151: #{tpu_custom_call.1} parent=143 // pred_region
          %s868 = sand.u32 %s146, 1
          %s869 = sand.u32 %s146, 1
          %s870 = smul.addr %s869, 32
          %s871 = scalar_lea.vmem [#allocation3], %s870
        $region152: #{tpu_custom_call.1} parent=143 // pred_fallthru
          _
      $region144: #{tpu_custom_call.1} parent=5 // pred_fallthru
        _
    $region6: #{tpu_custom_call.1} parent=1 // loop_footer
      %s16 = sadd.s32 1, %s12
    $region7: #{tpu_custom_call.1} parent=1 // loop_footer_branch
      %11 = sbr.rel target = $region3
    $region8: #{tpu_custom_call.1} parent=1 // loop_exit
      _

</llo_original>
